<compile_context>
chip_gen: v6e
topology: v6e:2x2x1
jax: 0.10.0
libtpu: 0.0.40
codegen_flags: <defaults>
</compile_context>

<pallas_src>
import jax
import jax.numpy as jnp
from jax.experimental import pallas as pl
from jax.experimental.pallas import tpu as pltpu


def _dd_kernel(x_ref, w1_ref, b1_ref, w2_ref, b2_ref, w3_ref, b3_ref, o_ref):
    x = x_ref[...].astype(jnp.float32)                                    # (tb, F)

    # ---- layer1: Linear (BN1 pre-folded into W1/b1) -> ReLU -----------------
    h = jnp.dot(x, w1_ref[...], preferred_element_type=jnp.float32)      # MXU
    h = jnp.maximum(h + b1_ref[...], 0.0)                                # VPU

    # ---- layer2: Linear (BN2 pre-folded into W2/b2) -> ReLU -----------------
    h = jnp.dot(h, w2_ref[...], preferred_element_type=jnp.float32)      # MXU
    h = jnp.maximum(h + b2_ref[...], 0.0)                                # VPU

    # ---- layer3: Linear -> Sigmoid ------------------------------------------
    logit = jnp.dot(h, w3_ref[...], preferred_element_type=jnp.float32)  # (tb, 1)
    logit = logit + b3_ref[...]
    o_ref[...] = (1.0 / (1.0 + jnp.exp(-logit))).astype(o_ref.dtype)     # EUP exp


def _pick_tile_b(batch, in_feature, hidden, max_tile_bytes=4 << 20):
    """Largest multiple-of-8 divisor of `batch` whose per-tile activation footprint
    (x tile + two hidden tiles + output) fits the byte budget."""
    row_bytes = 4 * (in_feature + 2 * hidden + 1)
    cap = max(8, max_tile_bytes // max(row_bytes, 1))
    start = min(batch, cap)
    start -= start % 8
    for t in range(start, 7, -8):
        if batch % t == 0:
            return t
    return batch   # tiny / awkward batch -> single full block (block == full dims)


def domain_discriminator(x, params, *, eps=1e-5):
    """Fused DomainDiscriminator forward.  x: (B, in_feature) -> (B, 1)."""
    B, F = x.shape
    H = params["w1"].shape[1]
    f32 = jnp.float32

    # ---- fold eval-mode BatchNorm1d into the preceding Linear (tiny tensors) ----
    def fold(w, b, g, beta, m, v):
        s = jnp.asarray(g, f32) * jax.lax.rsqrt(jnp.asarray(v, f32) + eps)   # (H,)
        wf = jnp.asarray(w, f32) * s[None, :]
        bf = (jnp.asarray(b, f32) - jnp.asarray(m, f32)) * s + jnp.asarray(beta, f32)
        return wf, bf.reshape(1, -1)

    w1f, b1f = fold(params["w1"], params["b1"], params["g1"], params["beta1"],
                    params["m1"], params["v1"])                              # (F,H),(1,H)
    w2f, b2f = fold(params["w2"], params["b2"], params["g2"], params["beta2"],
                    params["m2"], params["v2"])                              # (H,H),(1,H)
    w3 = jnp.asarray(params["w3"], f32)                                      # (H, 1)
    b3 = jnp.asarray(params["b3"], f32).reshape(1, 1)                        # (1, 1)
    param_arrays = [w1f, b1f, w2f, b2f, w3, b3]

    tile_b = _pick_tile_b(B, F, H)
    grid = (B // tile_b,)

    in_specs = [pl.BlockSpec((tile_b, F), lambda i: (i, 0))]
    # Constant index_map -> parameters stay resident in VMEM across grid steps.
    in_specs += [pl.BlockSpec(a.shape, lambda i: (0, 0)) for a in param_arrays]
    out_specs = pl.BlockSpec((tile_b, 1), lambda i: (i, 0))

    # VMEM budget: resident params + double-buffered x/out tiles + hidden intermediates.
    param_bytes = sum(a.size * a.dtype.itemsize for a in param_arrays)
    act_bytes = 2 * tile_b * (F + 1) * 4 + 2 * tile_b * H * 4
    vmem_limit = int(min(max(3 * (param_bytes + act_bytes), 16 << 20), 48 << 20))

    return pl.pallas_call(
        _dd_kernel,
        out_shape=jax.ShapeDtypeStruct((B, 1), x.dtype),
        grid=grid,
        in_specs=in_specs,
        out_specs=out_specs,
        compiler_params=pltpu.CompilerParams(
            dimension_semantics=("parallel",),
            vmem_limit_bytes=vmem_limit,
        ),
    )(x, *param_arrays)


def domain_discriminator_ref(x, p, eps=1e-5):
    """Pure-JAX reference (eval-mode BatchNorm1d, unfused), high-precision matmuls."""
    hi = jax.lax.Precision.HIGHEST

    def bn(h, g, b, m, v):
        return (h - m) / jnp.sqrt(v + eps) * g + b

    h = jnp.dot(x, p["w1"], precision=hi) + p["b1"]
    h = jnp.maximum(bn(h, p["g1"], p["beta1"], p["m1"], p["v1"]), 0.0)
    h = jnp.dot(h, p["w2"], precision=hi) + p["b2"]
    h = jnp.maximum(bn(h, p["g2"], p["beta2"], p["m2"], p["v2"]), 0.0)
    logit = jnp.dot(h, p["w3"], precision=hi) + p["b3"]
    return jax.nn.sigmoid(logit)


if __name__ == "__main__":
    key = jax.random.PRNGKey(0)
    B, F, H = 8, 32, 32                       # small shapes: batch=8, in_feature=32, hidden=32
    ks = jax.random.split(key, 16)

    x = jax.random.normal(ks[0], (B, F), jnp.float32)
    params = {
        "w1": 0.2 * jax.random.normal(ks[1], (F, H), jnp.float32),
        "b1": 0.1 * jax.random.normal(ks[2], (H,), jnp.float32),
        "g1": 1.0 + 0.1 * jax.random.normal(ks[3], (H,), jnp.float32),
        "beta1": 0.1 * jax.random.normal(ks[4], (H,), jnp.float32),
        "m1": 0.1 * jax.random.normal(ks[5], (H,), jnp.float32),
        "v1": 0.5 + jax.nn.softplus(jax.random.normal(ks[6], (H,), jnp.float32)),
        "w2": 0.2 * jax.random.normal(ks[7], (H, H), jnp.float32),
        "b2": 0.1 * jax.random.normal(ks[8], (H,), jnp.float32),
        "g2": 1.0 + 0.1 * jax.random.normal(ks[9], (H,), jnp.float32),
        "beta2": 0.1 * jax.random.normal(ks[10], (H,), jnp.float32),
        "m2": 0.1 * jax.random.normal(ks[11], (H,), jnp.float32),
        "v2": 0.5 + jax.nn.softplus(jax.random.normal(ks[12], (H,), jnp.float32)),
        "w3": 0.2 * jax.random.normal(ks[13], (H, 1), jnp.float32),
        "b3": 0.1 * jax.random.normal(ks[14], (), jnp.float32),
    }

    y = domain_discriminator(x, params)
    y = jax.block_until_ready(y)

    y_ref = domain_discriminator_ref(x, params)
    assert y.shape == (B, 1) and y.dtype == x.dtype
    assert jnp.allclose(y, y_ref, atol=1e-3, rtol=1e-3), float(jnp.max(jnp.abs(y - y_ref)))
    assert bool(jnp.all((y >= 0.0) & (y <= 1.0)))

    print("KERNEL_OK")
</pallas_src>

<mosaic_0001>
module attributes {stable_mosaic.version = 11 : i64} {
  func.func @_dd_kernel(%arg0: i32, %arg1: memref<8x32xf32, #tpu.memory_space<vmem>>, %arg2: memref<32x32xf32, #tpu.memory_space<vmem>>, %arg3: memref<1x32xf32, #tpu.memory_space<vmem>>, %arg4: memref<32x32xf32, #tpu.memory_space<vmem>>, %arg5: memref<1x32xf32, #tpu.memory_space<vmem>>, %arg6: memref<32x1xf32, #tpu.memory_space<vmem>>, %arg7: memref<1x1xf32, #tpu.memory_space<vmem>>, %arg8: memref<8x1xf32, #tpu.memory_space<vmem>>) attributes {dimension_semantics = [#tpu.dimension_semantics<parallel>], iteration_bounds = array<i64: 1>, scalar_prefetch = 0 : i64, scratch_operands = 0 : i64, tpu.core_type = #tpu.core_type<tc>, window_params = [{transform_indices = @transform_0, window_bounds = array<i64: 8, 32>}, {pipeline_mode = #tpu.pipeline_mode<synchronous>, transform_indices = @transform_1, window_bounds = array<i64: 32, 32>}, {pipeline_mode = #tpu.pipeline_mode<synchronous>, transform_indices = @transform_2, window_bounds = array<i64: 1, 32>}, {pipeline_mode = #tpu.pipeline_mode<synchronous>, transform_indices = @transform_3, window_bounds = array<i64: 32, 32>}, {pipeline_mode = #tpu.pipeline_mode<synchronous>, transform_indices = @transform_4, window_bounds = array<i64: 1, 32>}, {pipeline_mode = #tpu.pipeline_mode<synchronous>, transform_indices = @transform_5, window_bounds = array<i64: 32, 1>}, {pipeline_mode = #tpu.pipeline_mode<synchronous>, transform_indices = @transform_6, window_bounds = array<i64: 1, 1>}, {transform_indices = @transform_7, window_bounds = array<i64: 8, 1>}]} {
    %c0 = arith.constant 0 : index
    %c0_0 = arith.constant 0 : index
    %0 = vector.load %arg1[%c0, %c0_0] : memref<8x32xf32, #tpu.memory_space<vmem>>, vector<8x32xf32>
    %c0_1 = arith.constant 0 : index
    %c0_2 = arith.constant 0 : index
    %1 = vector.load %arg2[%c0_1, %c0_2] : memref<32x32xf32, #tpu.memory_space<vmem>>, vector<32x32xf32>
    %cst = arith.constant dense<0.000000e+00> : vector<8x32xf32>
    %2 = tpu.matmul %0, %1, %cst {dimension_numbers = #tpu.dot_dimension_numbers<[1], [0], [0], [1], [0, 0, 1, 1], [], []>} : vector<8x32xf32>, vector<32x32xf32>, vector<8x32xf32> -> vector<8x32xf32>
    %c0_3 = arith.constant 0 : index
    %c0_4 = arith.constant 0 : index
    %3 = vector.load %arg3[%c0_3, %c0_4] : memref<1x32xf32, #tpu.memory_space<vmem>>, vector<1x32xf32>
    %4 = vector.broadcast %3 : vector<1x32xf32> to vector<8x32xf32>
    %5 = arith.addf %2, %4 : vector<8x32xf32>
    %cst_5 = arith.constant 0.000000e+00 : f32
    %6 = vector.broadcast %cst_5 : f32 to vector<8x32xf32>
    %7 = arith.maximumf %5, %6 : vector<8x32xf32>
    %c0_6 = arith.constant 0 : index
    %c0_7 = arith.constant 0 : index
    %8 = vector.load %arg4[%c0_6, %c0_7] : memref<32x32xf32, #tpu.memory_space<vmem>>, vector<32x32xf32>
    %cst_8 = arith.constant dense<0.000000e+00> : vector<8x32xf32>
    %9 = tpu.matmul %7, %8, %cst_8 {dimension_numbers = #tpu.dot_dimension_numbers<[1], [0], [0], [1], [0, 0, 1, 1], [], []>} : vector<8x32xf32>, vector<32x32xf32>, vector<8x32xf32> -> vector<8x32xf32>
    %c0_9 = arith.constant 0 : index
    %c0_10 = arith.constant 0 : index
    %10 = vector.load %arg5[%c0_9, %c0_10] : memref<1x32xf32, #tpu.memory_space<vmem>>, vector<1x32xf32>
    %11 = vector.broadcast %10 : vector<1x32xf32> to vector<8x32xf32>
    %12 = arith.addf %9, %11 : vector<8x32xf32>
    %cst_11 = arith.constant 0.000000e+00 : f32
    %13 = vector.broadcast %cst_11 : f32 to vector<8x32xf32>
    %14 = arith.maximumf %12, %13 : vector<8x32xf32>
    %c0_12 = arith.constant 0 : index
    %c0_13 = arith.constant 0 : index
    %15 = vector.load %arg6[%c0_12, %c0_13] : memref<32x1xf32, #tpu.memory_space<vmem>>, vector<32x1xf32>
    %cst_14 = arith.constant dense<0.000000e+00> : vector<8x1xf32>
    %16 = tpu.matmul %14, %15, %cst_14 {dimension_numbers = #tpu.dot_dimension_numbers<[1], [0], [0], [1], [0, 0, 1, 1], [], []>} : vector<8x32xf32>, vector<32x1xf32>, vector<8x1xf32> -> vector<8x1xf32>
    %c0_15 = arith.constant 0 : index
    %c0_16 = arith.constant 0 : index
    %17 = vector.load %arg7[%c0_15, %c0_16] : memref<1x1xf32, #tpu.memory_space<vmem>>, vector<1x1xf32>
    %18 = vector.broadcast %17 : vector<1x1xf32> to vector<8x1xf32>
    %19 = arith.addf %16, %18 : vector<8x1xf32>
    %cst_17 = arith.constant 0.000000e+00 : f32
    %20 = vector.broadcast %cst_17 : f32 to vector<8x1xf32>
    %21 = arith.subf %20, %19 : vector<8x1xf32>
    %22 = math.exp %21 : vector<8x1xf32>
    %cst_18 = arith.constant 1.000000e+00 : f32
    %23 = vector.broadcast %cst_18 : f32 to vector<8x1xf32>
    %24 = arith.addf %23, %22 : vector<8x1xf32>
    %cst_19 = arith.constant 1.000000e+00 : f32
    %25 = vector.broadcast %cst_19 : f32 to vector<8x1xf32>
    %26 = arith.divf %25, %24 : vector<8x1xf32>
    %c0_20 = arith.constant 0 : index
    %c0_21 = arith.constant 0 : index
    %27 = vector.load %arg8[%c0_20, %c0_21] : memref<8x1xf32, #tpu.memory_space<vmem>>, vector<8x1xf32>
    tpu.vector_store %arg8[%c0_20, %c0_21], %26 {strides = array<i32>} : memref<8x1xf32, #tpu.memory_space<vmem>>, vector<8x1xf32>,
    return
  }
  func.func @transform_0(%arg0: i32) -> (i32, i32) {
    %c0_i32 = arith.constant 0 : i32
    %c0_i32_0 = arith.constant 0 : i32
    return %arg0, %c0_i32 : i32, i32
  }
  func.func @transform_1(%arg0: i32) -> (i32, i32) {
    %c0_i32 = arith.constant 0 : i32
    %c0_i32_0 = arith.constant 0 : i32
    %c0_i32_1 = arith.constant 0 : i32
    return %c0_i32, %c0_i32_0 : i32, i32
  }
  func.func @transform_2(%arg0: i32) -> (i32, i32) {
    %c0_i32 = arith.constant 0 : i32
    %c0_i32_0 = arith.constant 0 : i32
    %c0_i32_1 = arith.constant 0 : i32
    return %c0_i32, %c0_i32_0 : i32, i32
  }
  func.func @transform_3(%arg0: i32) -> (i32, i32) {
    %c0_i32 = arith.constant 0 : i32
    %c0_i32_0 = arith.constant 0 : i32
    %c0_i32_1 = arith.constant 0 : i32
    return %c0_i32, %c0_i32_0 : i32, i32
  }
  func.func @transform_4(%arg0: i32) -> (i32, i32) {
    %c0_i32 = arith.constant 0 : i32
    %c0_i32_0 = arith.constant 0 : i32
    %c0_i32_1 = arith.constant 0 : i32
    return %c0_i32, %c0_i32_0 : i32, i32
  }
  func.func @transform_5(%arg0: i32) -> (i32, i32) {
    %c0_i32 = arith.constant 0 : i32
    %c0_i32_0 = arith.constant 0 : i32
    %c0_i32_1 = arith.constant 0 : i32
    return %c0_i32, %c0_i32_0 : i32, i32
  }
  func.func @transform_6(%arg0: i32) -> (i32, i32) {
    %c0_i32 = arith.constant 0 : i32
    %c0_i32_0 = arith.constant 0 : i32
    %c0_i32_1 = arith.constant 0 : i32
    return %c0_i32, %c0_i32_0 : i32, i32
  }
  func.func @transform_7(%arg0: i32) -> (i32, i32) {
    %c0_i32 = arith.constant 0 : i32
    %c0_i32_0 = arith.constant 0 : i32
    return %arg0, %c0_i32 : i32, i32
  }
}

</mosaic_0001>

<llo_original>
// kernel: tpu_custom_call.1
$region0: #{tpu_custom_call.1}
  #allocation0 [shape = 'u32[]', space=smem, size = 0x4, offset = 0x4, fixed_abs, tag = 'smem constant byte address 0x4 - core index']
  #allocation1 [shape = 'u32[144,128]{1,0:T(1,128)}', space=vmem, size = 0x12000, scoped, tag = 'internal scratch']
  #allocation2 [shape = 'f32[1,1]{1,0:T(1,128)S(1)}', space=vmem, size = 0x200, scoped, tag = 'scoped memory for tpu_custom_call.1']
  %s0 = inlined_call_operand.hbm [shape: f32[8,32], index: 0, kind: input, shape index: {}]
  %s1 = inlined_call_operand.vmem [shape: f32[32,32], index: 1, kind: input, shape index: {}]
  %s2 = inlined_call_operand.vmem [shape: f32[1,32], index: 2, kind: input, shape index: {}]
  %s3 = inlined_call_operand.hbm [shape: f32[32,32], index: 3, kind: input, shape index: {}]
  %s4 = inlined_call_operand.vmem [shape: f32[1,32], index: 4, kind: input, shape index: {}]
  %s5 = inlined_call_operand.vmem [shape: f32[32,1], index: 5, kind: input, shape index: {}]
  %s6 = inlined_call_operand.<no memory space> [shape: f32[1,1], index: 6, kind: input, shape index: {}]
  %s7 = inlined_call_operand.vmem [shape: f32[8,1], index: 7, kind: output, shape index: {}]
  %s8 = sld [smem:[#allocation0]]
  $region46: #{tpu_custom_call.1} parent=0
    _
  %s10 = ssub.s32 1, %s8
  %s11 = scalar_select 0, %s10, %s8
  %v12 = vstv %s6
  %13 = vst [vmem:[#allocation2] sm:$0x1] %v12
  $region1: #{tpu_custom_call.1} parent=0
    #allocation3 [shape = 'u8[4096]{0}', space=vmem, size = 0x1000, scoped, tag = 'input window, operand 0, single buffered']
    #allocation4 [shape = 's32[1]{0}', space=sflag, size = 0x4, scoped, tag = 'scoped memory for tpu_custom_call.1']
    #allocation5 [shape = 'u8[16384]{0}', space=vmem, size = 0x4000, scoped, tag = 'input window, operand 3, single buffered']
    #allocation6 [shape = 's32[1]{0}', space=sflag, size = 0x4, scoped, tag = 'scoped memory for tpu_custom_call.1']
    %14 = vsyncpa [#allocation4], 0
    %15 = vsyncpa [#allocation6], 0
    // Predicated region
    $region2: #{tpu_custom_call.1} parent=1 // pred_check
      _
    $region3: #{tpu_custom_call.1} parent=1 // pred_check_branch
      %17 = sbr.rel (0) target = $region5
    $region4: #{tpu_custom_call.1} parent=1 // pred_region
      %s19 = ssub.s32 128, 128
      %20 = vsyncadd [#allocation4], %s19
      %s22 = sshll.u32 [#allocation3], 4
      %s23 = int_to_ptr.vmem [resolvable:$true] %s22
      %25 = dma.hbm_to_vmem [thread:$0]  %s0, 128, %s23, [#allocation4]
    $region5: #{tpu_custom_call.1} parent=1 // pred_fallthru
      _
    // Predicated region
    $region6: #{tpu_custom_call.1} parent=1 // pred_check
      _
    $region7: #{tpu_custom_call.1} parent=1 // pred_check_branch
      %27 = sbr.rel (0) target = $region9
    $region8: #{tpu_custom_call.1} parent=1 // pred_region
      _
    $region9: #{tpu_custom_call.1} parent=1 // pred_fallthru
      _
    // Predicated region
    $region10: #{tpu_custom_call.1} parent=1 // pred_check
      _
    $region11: #{tpu_custom_call.1} parent=1 // pred_check_branch
      %29 = sbr.rel (0) target = $region13
    $region12: #{tpu_custom_call.1} parent=1 // pred_region
      _
    $region13: #{tpu_custom_call.1} parent=1 // pred_fallthru
      _
    // Predicated region
    $region14: #{tpu_custom_call.1} parent=1 // pred_check
      _
    $region15: #{tpu_custom_call.1} parent=1 // pred_check_branch
      %31 = sbr.rel (0) target = $region17
    $region16: #{tpu_custom_call.1} parent=1 // pred_region
      %s33 = ssub.s32 512, 512
      %34 = vsyncadd [#allocation6], %s33
      %s35 = sshll.u32 [#allocation5], 4
      %s36 = int_to_ptr.vmem [resolvable:$true] %s35
      %41 = dma.hbm_to_vmem [thread:$0]  %s3, 512, %s36, [#allocation6], 128, 128, 8
    $region17: #{tpu_custom_call.1} parent=1 // pred_fallthru
      _
    // Predicated region
    $region18: #{tpu_custom_call.1} parent=1 // pred_check
      _
    $region19: #{tpu_custom_call.1} parent=1 // pred_check_branch
      %43 = sbr.rel (0) target = $region21
    $region20: #{tpu_custom_call.1} parent=1 // pred_region
      _
    $region21: #{tpu_custom_call.1} parent=1 // pred_fallthru
      _
    // Predicated region
    $region22: #{tpu_custom_call.1} parent=1 // pred_check
      _
    $region23: #{tpu_custom_call.1} parent=1 // pred_check_branch
      %45 = sbr.rel (0) target = $region25
    $region24: #{tpu_custom_call.1} parent=1 // pred_region
      _
    $region25: #{tpu_custom_call.1} parent=1 // pred_fallthru
      _
    // Predicated region
    $region26: #{tpu_custom_call.1} parent=1 // pred_check
      _
    $region27: #{tpu_custom_call.1} parent=1 // pred_check_branch
      %47 = sbr.rel (0) target = $region29
    $region28: #{tpu_custom_call.1} parent=1 // pred_region
      _
    $region29: #{tpu_custom_call.1} parent=1 // pred_fallthru
      _
    // Predicated region
    $region30: #{tpu_custom_call.1} parent=1 // pred_check
      _
    $region31: #{tpu_custom_call.1} parent=1 // pred_check_branch
      %49 = sbr.rel (0) target = $region33
    $region32: #{tpu_custom_call.1} parent=1 // pred_region
      %50 = dma.done [#allocation4], 128
    $region33: #{tpu_custom_call.1} parent=1 // pred_fallthru
      _
    // Predicated region
    $region34: #{tpu_custom_call.1} parent=1 // pred_check
      _
    $region35: #{tpu_custom_call.1} parent=1 // pred_check_branch
      %52 = sbr.rel (0) target = $region37
    $region36: #{tpu_custom_call.1} parent=1 // pred_region
      %53 = dma.done [#allocation6], 512
    $region37: #{tpu_custom_call.1} parent=1 // pred_fallthru
      _
    %v54 = vld [vmem:[#allocation3] sm:$0xff]
    %v55 = vld [vmem:[%s1] sm:$0xff]
    %v56 = vld [vmem:[%s1 + $0x8] sm:$0xff]
    %v57 = vld [vmem:[%s1 + $0x10] sm:$0xff]
    %v58 = vld [vmem:[%s1 + $0x18] sm:$0xff]
    %v59 = vld [vmem:[%s2] sm:$0x1]
    %v61 = vlaneseq
    %v62 = vshrl.u32 %v61, 7
    %v63 = vsub.s32 0, %v62
    %v64 = vrot.slane %v59, %v63
    %vm66 = vcmask 261120
    %v68 = vsel %vm66, %v54, 0
    %70 = vmatprep.subr.mxu0 0.0
    %71 = vmatpush1.msra.mxu0 0.0
    %72 = vmatprep.subr.mxu0 0.0
    %73 = vmatpush1.msra.mxu0 0.0
    %74 = vmatprep.subr.mxu0 0.0
    %75 = vmatpush1.msra.mxu0 0.0
    %76 = vmatprep.subr.mxu0 0.0
    %77 = vmatpush1.msra.mxu0 0.0
    %78 = vmatprep.subr.mxu0 0.0
    %79 = vmatpush1.msra.mxu0 0.0
    %80 = vmatprep.subr.mxu0 0.0
    %81 = vmatpush1.msra.mxu0 0.0
    %82 = vmatprep.subr.mxu0 0.0
    %83 = vmatpush1.msra.mxu0 0.0
    %84 = vmatprep.subr.mxu0 0.0
    %85 = vmatpush1.msra.mxu0 0.0
    %86 = vmatprep.subr.mxu0 0.0
    %87 = vmatpush1.msra.mxu0 0.0
    %88 = vmatprep.subr.mxu0 0.0
    %89 = vmatpush1.msra.mxu0 0.0
    %90 = vmatprep.subr.mxu0 0.0
    %91 = vmatpush1.msra.mxu0 0.0
    %92 = vmatprep.subr.mxu0 0.0
    %93 = vmatpush1.msra.mxu0 0.0
    %94 = vmatprep.subr.mxu0 0.0
    %95 = vmatpush1.msra.mxu0 %v58
    %96 = vmatprep.subr.mxu0 0.0
    %97 = vmatpush1.msra.mxu0 %v57
    %98 = vmatprep.subr.mxu0 0.0
    %99 = vmatpush1.msra.mxu0 %v56
    %100 = vmatprep.subr.mxu0 0.0
    %101 = vmatpush1.msra.mxu0 %v55
    %102 = vmatprep.subr.mxu0 0.0
    %103 = vmatpush2.msra.mxu0 0.0
    %104 = vmatprep.subr.mxu0 0.0
    %105 = vmatpush2.msra.mxu0 0.0
    %106 = vmatprep.subr.mxu0 0.0
    %107 = vmatpush2.msra.mxu0 0.0
    %108 = vmatprep.subr.mxu0 0.0
    %109 = vmatpush2.msra.mxu0 0.0
    %110 = vmatprep.subr.mxu0 0.0
    %111 = vmatpush2.msra.mxu0 0.0
    %112 = vmatprep.subr.mxu0 0.0
    %113 = vmatpush2.msra.mxu0 0.0
    %114 = vmatprep.subr.mxu0 0.0
    %115 = vmatpush2.msra.mxu0 0.0
    %116 = vmatprep.subr.mxu0 0.0
    %117 = vmatpush2.msra.mxu0 0.0
    %118 = vmatprep.subr.mxu0 0.0
    %119 = vmatpush2.msra.mxu0 0.0
    %120 = vmatprep.subr.mxu0 0.0
    %121 = vmatpush2.msra.mxu0 0.0
    %122 = vmatprep.subr.mxu0 0.0
    %123 = vmatpush2.msra.mxu0 0.0
    %124 = vmatprep.subr.mxu0 0.0
    %125 = vmatpush2.msra.mxu0 0.0
    %126 = vmatprep.subr.mxu0 0.0
    %127 = vmatpush2.msra.mxu0 0.0
    %128 = vmatprep.subr.mxu0 0.0
    %129 = vmatpush2.msra.mxu0 0.0
    %130 = vmatprep.subr.mxu0 0.0
    %131 = vmatpush2.msra.mxu0 0.0
    %132 = vmatprep.subr.mxu0 0.0
    %133 = vmatpush2.msra.mxu0 0.0
    %134 = vmatprep.mubr.f32.mxu0 0.0
    %135 = vmatmul.mubr.f32.gmra.mxu0 %v68
    %v136 = vpop.f32.mrf.mxu0
    %v137 = vadd.f32 %v64, %v136
    %v138 = vpop.f32.mrf.mxu0
    %139 = vdwg.mxu0
    %v140 = vmax.f32 %v137, 0.0
    %v141 = vld [vmem:[#allocation5] sm:$0xff]
    %v142 = vld [vmem:[#allocation5 + $0x8] sm:$0xff]
    %v143 = vld [vmem:[#allocation5 + $0x10] sm:$0xff]
    %v144 = vld [vmem:[#allocation5 + $0x18] sm:$0xff]
    %v145 = vld [vmem:[%s4] sm:$0x1]
    %v147 = vlaneseq
    %v148 = vshrl.u32 %v147, 7
    %v149 = vsub.s32 0, %v148
    %v150 = vrot.slane %v145, %v149
    %v153 = vsel %vm66, %v140, 0
    %155 = vmatprep.subr.mxu0 0.0
    %156 = vmatpush1.msra.mxu0 0.0
    %157 = vmatprep.subr.mxu0 0.0
    %158 = vmatpush1.msra.mxu0 0.0
    %159 = vmatprep.subr.mxu0 0.0
    %160 = vmatpush1.msra.mxu0 0.0
    %161 = vmatprep.subr.mxu0 0.0
    %162 = vmatpush1.msra.mxu0 0.0
    %163 = vmatprep.subr.mxu0 0.0
    %164 = vmatpush1.msra.mxu0 0.0
    %165 = vmatprep.subr.mxu0 0.0
    %166 = vmatpush1.msra.mxu0 0.0
    %167 = vmatprep.subr.mxu0 0.0
    %168 = vmatpush1.msra.mxu0 0.0
    %169 = vmatprep.subr.mxu0 0.0
    %170 = vmatpush1.msra.mxu0 0.0
    %171 = vmatprep.subr.mxu0 0.0
    %172 = vmatpush1.msra.mxu0 0.0
    %173 = vmatprep.subr.mxu0 0.0
    %174 = vmatpush1.msra.mxu0 0.0
    %175 = vmatprep.subr.mxu0 0.0
    %176 = vmatpush1.msra.mxu0 0.0
    %177 = vmatprep.subr.mxu0 0.0
    %178 = vmatpush1.msra.mxu0 0.0
    %179 = vmatprep.subr.mxu0 0.0
    %180 = vmatpush1.msra.mxu0 %v144
    %181 = vmatprep.subr.mxu0 0.0
    %182 = vmatpush1.msra.mxu0 %v143
    %183 = vmatprep.subr.mxu0 0.0
    %184 = vmatpush1.msra.mxu0 %v142
    %185 = vmatprep.subr.mxu0 0.0
    %186 = vmatpush1.msra.mxu0 %v141
    %187 = vmatprep.subr.mxu0 0.0
    %188 = vmatpush2.msra.mxu0 0.0
    %189 = vmatprep.subr.mxu0 0.0
    %190 = vmatpush2.msra.mxu0 0.0
    %191 = vmatprep.subr.mxu0 0.0
    %192 = vmatpush2.msra.mxu0 0.0
    %193 = vmatprep.subr.mxu0 0.0
    %194 = vmatpush2.msra.mxu0 0.0
    %195 = vmatprep.subr.mxu0 0.0
    %196 = vmatpush2.msra.mxu0 0.0
    %197 = vmatprep.subr.mxu0 0.0
    %198 = vmatpush2.msra.mxu0 0.0
    %199 = vmatprep.subr.mxu0 0.0
    %200 = vmatpush2.msra.mxu0 0.0
    %201 = vmatprep.subr.mxu0 0.0
    %202 = vmatpush2.msra.mxu0 0.0
    %203 = vmatprep.subr.mxu0 0.0
    %204 = vmatpush2.msra.mxu0 0.0
    %205 = vmatprep.subr.mxu0 0.0
    %206 = vmatpush2.msra.mxu0 0.0
    %207 = vmatprep.subr.mxu0 0.0
    %208 = vmatpush2.msra.mxu0 0.0
    %209 = vmatprep.subr.mxu0 0.0
    %210 = vmatpush2.msra.mxu0 0.0
    %211 = vmatprep.subr.mxu0 0.0
    %212 = vmatpush2.msra.mxu0 0.0
    %213 = vmatprep.subr.mxu0 0.0
    %214 = vmatpush2.msra.mxu0 0.0
    %215 = vmatprep.subr.mxu0 0.0
    %216 = vmatpush2.msra.mxu0 0.0
    %217 = vmatprep.subr.mxu0 0.0
    %218 = vmatpush2.msra.mxu0 0.0
    %219 = vmatprep.mubr.f32.mxu0 0.0
    %220 = vmatmul.mubr.f32.gmra.mxu0 %v153
    %v221 = vpop.f32.mrf.mxu0
    %v222 = vadd.f32 %v150, %v221
    %v223 = vpop.f32.mrf.mxu0
    %224 = vdwg.mxu0
    %v225 = vmax.f32 %v222, 0.0
    %v226 = vld [vmem:[%s5] sm:$0xff]
    %v227 = vld [vmem:[%s5 + $0x8] sm:$0xff]
    %v228 = vld [vmem:[%s5 + $0x10] sm:$0xff]
    %v229 = vld [vmem:[%s5 + $0x18] sm:$0xff]
    %v230 = vld [vmem:[#allocation2] sm:$0x1]
    %v232 = vlaneseq
    %v233 = vshrl.u32 %v232, 7
    %v234 = vsub.s32 0, %v233
    %v235 = vrot.slane %v230, %v234
    %v238 = vsel %vm66, %v225, 0
    %240 = vmatprep.subr.mxu0 0.0
    %241 = vmatpush1.msra.mxu0 0.0
    %242 = vmatprep.subr.mxu0 0.0
    %243 = vmatpush1.msra.mxu0 0.0
    %244 = vmatprep.subr.mxu0 0.0
    %245 = vmatpush1.msra.mxu0 0.0
    %246 = vmatprep.subr.mxu0 0.0
    %247 = vmatpush1.msra.mxu0 0.0
    %248 = vmatprep.subr.mxu0 0.0
    %249 = vmatpush1.msra.mxu0 0.0
    %250 = vmatprep.subr.mxu0 0.0
    %251 = vmatpush1.msra.mxu0 0.0
    %252 = vmatprep.subr.mxu0 0.0
    %253 = vmatpush1.msra.mxu0 0.0
    %254 = vmatprep.subr.mxu0 0.0
    %255 = vmatpush1.msra.mxu0 0.0
    %256 = vmatprep.subr.mxu0 0.0
    %257 = vmatpush1.msra.mxu0 0.0
    %258 = vmatprep.subr.mxu0 0.0
    %259 = vmatpush1.msra.mxu0 0.0
    %260 = vmatprep.subr.mxu0 0.0
    %261 = vmatpush1.msra.mxu0 0.0
    %262 = vmatprep.subr.mxu0 0.0
    %263 = vmatpush1.msra.mxu0 0.0
    %264 = vmatprep.subr.mxu0 0.0
    %265 = vmatpush1.msra.mxu0 %v229
    %266 = vmatprep.subr.mxu0 0.0
    %267 = vmatpush1.msra.mxu0 %v228
    %268 = vmatprep.subr.mxu0 0.0
    %269 = vmatpush1.msra.mxu0 %v227
    %270 = vmatprep.subr.mxu0 0.0
    %271 = vmatpush1.msra.mxu0 %v226
    %272 = vmatprep.subr.mxu0 0.0
    %273 = vmatpush2.msra.mxu0 0.0
    %274 = vmatprep.subr.mxu0 0.0
    %275 = vmatpush2.msra.mxu0 0.0
    %276 = vmatprep.subr.mxu0 0.0
    %277 = vmatpush2.msra.mxu0 0.0
    %278 = vmatprep.subr.mxu0 0.0
    %279 = vmatpush2.msra.mxu0 0.0
    %280 = vmatprep.subr.mxu0 0.0
    %281 = vmatpush2.msra.mxu0 0.0
    %282 = vmatprep.subr.mxu0 0.0
    %283 = vmatpush2.msra.mxu0 0.0
    %284 = vmatprep.subr.mxu0 0.0
    %285 = vmatpush2.msra.mxu0 0.0
    %286 = vmatprep.subr.mxu0 0.0
    %287 = vmatpush2.msra.mxu0 0.0
    %288 = vmatprep.subr.mxu0 0.0
    %289 = vmatpush2.msra.mxu0 0.0
    %290 = vmatprep.subr.mxu0 0.0
    %291 = vmatpush2.msra.mxu0 0.0
    %292 = vmatprep.subr.mxu0 0.0
    %293 = vmatpush2.msra.mxu0 0.0
    %294 = vmatprep.subr.mxu0 0.0
    %295 = vmatpush2.msra.mxu0 0.0
    %296 = vmatprep.subr.mxu0 0.0
    %297 = vmatpush2.msra.mxu0 0.0
    %298 = vmatprep.subr.mxu0 0.0
    %299 = vmatpush2.msra.mxu0 0.0
    %300 = vmatprep.subr.mxu0 0.0
    %301 = vmatpush2.msra.mxu0 0.0
    %302 = vmatprep.subr.mxu0 0.0
    %303 = vmatpush2.msra.mxu0 0.0
    %304 = vmatprep.mubr.f32.mxu0 0.0
    %305 = vmatmul.mubr.f32.gmra.mxu0 %v238
    %v306 = vpop.f32.mrf.mxu0
    %v307 = vadd.f32 %v235, %v306
    %v308 = vpop.f32.mrf.mxu0
    %309 = vdwg.mxu0
    %v310 = vsub.f32 0.0, %v307
    %v311 = vmul.f32 %v310, 1.442695
    %v312 = vpow.pop %v311
    %v313 = vadd.f32 %v312, 1.0
    %v314 = vrcp.pop %v313
    %v315 = vmul.f32 1.0, %v314
    %vm316 = vcmask 7168
    %317 = vst.msk [vmem:[%s7] sm:$0xff] %vm316, %v315
    // Predicated region
    $region38: #{tpu_custom_call.1} parent=1 // pred_check
      _
    $region39: #{tpu_custom_call.1} parent=1 // pred_check_branch
      %319 = sbr.rel (0) target = $region41
    $region40: #{tpu_custom_call.1} parent=1 // pred_region
      _
    $region41: #{tpu_custom_call.1} parent=1 // pred_fallthru
      _
    // Predicated region
    $region42: #{tpu_custom_call.1} parent=1 // pred_check
      _
    $region43: #{tpu_custom_call.1} parent=1 // pred_check_branch
      %321 = sbr.rel (0) target = $region45
    $region44: #{tpu_custom_call.1} parent=1 // pred_region
      _
    $region45: #{tpu_custom_call.1} parent=1 // pred_fallthru
      _
    %322 = vsyncpa [#allocation4], 1
    %323 = vsyncpa [#allocation6], 1

</llo_original>
